<compile_context>
chip_gen: v7x
topology: tpu7x:2x2x1
jax: 0.10.0
libtpu: 0.0.40
codegen_flags: <defaults>
</compile_context>

<pallas_src>
from types import SimpleNamespace

import jax
import jax.numpy as jnp
import numpy as np
from jax.experimental import pallas as pl
from jax.experimental.pallas import tpu as pltpu


def _round_up(x, m):
    return (x + m - 1) // m * m


# ----------------------------- kernel 1: tiled sum-of-squared-error ----------------
def _sse_kernel(a_ref, b_ref, o_ref):
    @pl.when(pl.program_id(1) == 0)
    def _():
        o_ref[...] = jnp.zeros_like(o_ref)

    d = a_ref[...] - b_ref[...]
    sq = d * d
    # VALU-only fold: sum aligned 8-row groups into one (8, 128) vreg-sized accumulator.
    acc = sq[0:8, :]
    for k in range(1, sq.shape[0] // 8):
        acc = acc + sq[8 * k:8 * (k + 1), :]
    o_ref[...] += acc


def mse_loss(a, b, *, block_rows=512):
    """torch.nn.MSELoss (mean over all elements), f32 accumulation."""
    n = a.size
    af = a.reshape(-1).astype(jnp.float32)
    bf = b.reshape(-1).astype(jnp.float32)
    lanes = 128
    rows = _round_up(af.shape[0], lanes) // lanes
    per_core = _round_up(-(-rows // 2), 8)          # explicit 2-way core split (v7x)
    br = min(block_rows, per_core)
    per_core = _round_up(per_core, br)
    total_rows = 2 * per_core
    flat = total_rows * lanes

    def prep(x):
        return jnp.pad(x, (0, flat - x.shape[0])).reshape(total_rows, lanes)

    a2, b2 = prep(af), prep(bf)
    nblocks = per_core // br
    out = pl.pallas_call(
        _sse_kernel,
        out_shape=jax.ShapeDtypeStruct((16, 128), jnp.float32),    # 2 cores x (8,128)
        grid_spec=pltpu.PrefetchScalarGridSpec(
            num_scalar_prefetch=0,
            grid=(2, nblocks),
            in_specs=[pl.BlockSpec((br, lanes), lambda c, i: (c * nblocks + i, 0)),
                      pl.BlockSpec((br, lanes), lambda c, i: (c * nblocks + i, 0))],
            out_specs=pl.BlockSpec((8, 128), lambda c, i: (c, 0)),
        ),
        compiler_params=pltpu.CompilerParams(
            dimension_semantics=("parallel", "arbitrary")),
    )(a2, b2)
    return jnp.sum(out) / n


# ----------------------------- kernel 2: weighted cross-entropy --------------------
def _wce_kernel(lg_ref, lab_ref, w_ref, num_ref, den_ref):
    @pl.when(pl.program_id(1) == 0)
    def _():
        num_ref[...] = jnp.zeros_like(num_ref)
        den_ref[...] = jnp.zeros_like(den_ref)

    lg = lg_ref[...]                       # (C, lt) f32, classes on sublanes
    lab = lab_ref[0]                       # (1, lt) int32, -1 on padded pixels
    w = w_ref[...]                         # (C, 1) f32 class weights
    m = jnp.max(lg, axis=0, keepdims=True)
    lse = m + jnp.log(jnp.sum(jnp.exp(lg - m), axis=0, keepdims=True))
    cls = jax.lax.broadcasted_iota(jnp.int32, lg.shape, 0)
    wb = (cls == lab).astype(jnp.float32) * w            # weight only at the target class
    num_ref[0] += wb * (lse - lg)                        # -w[y]*log_softmax[y], VALU adds
    den_ref[0] += wb


def weighted_cross_entropy(logits_nchw, labels, class_weights, *, lane_tile=128):
    # torch.nn.CrossEntropyLoss(weight=w): sum_i w[y_i]*nll_i / sum_i w[y_i]
    # NCHW is consumed directly (pure reshape, classes land on sublanes): no XLA
    # transpose, no 16->128 lane padding, no -1e9 sentinels.
    N, C, H, W = logits_nchw.shape
    assert C % 8 == 0
    HW = H * W
    HWp = _round_up(HW, lane_tile)
    lg = logits_nchw.astype(jnp.float32).reshape(N * C, HW)
    lb = labels.astype(jnp.int32).reshape(N, 1, HW)
    if HWp != HW:
        lg = jnp.pad(lg, ((0, 0), (0, HWp - HW)))
        lb = jnp.pad(lb, ((0, 0), (0, 0), (0, HWp - HW)), constant_values=-1)
    w2 = class_weights.astype(jnp.float32).reshape(C, 1)
    num, den = pl.pallas_call(
        _wce_kernel,
        out_shape=(jax.ShapeDtypeStruct((N, C, lane_tile), jnp.float32),
                   jax.ShapeDtypeStruct((N, C, lane_tile), jnp.float32)),
        grid_spec=pltpu.PrefetchScalarGridSpec(
            num_scalar_prefetch=0,
            grid=(N, HWp // lane_tile),
            in_specs=[
                pl.BlockSpec((C, lane_tile), lambda n, p: (n, p)),
                pl.BlockSpec((1, 1, lane_tile), lambda n, p: (n, 0, p)),
                pl.BlockSpec((C, 1), lambda n, p: (0, 0)),
            ],
            out_specs=(
                pl.BlockSpec((1, C, lane_tile), lambda n, p: (n, 0, 0)),
                pl.BlockSpec((1, C, lane_tile), lambda n, p: (n, 0, 0)),
            ),
        ),
        compiler_params=pltpu.CompilerParams(
            dimension_semantics=("parallel", "arbitrary")),
    )(lg, lb, w2)
    return jnp.sum(num) / jnp.sum(den)


# ------------------ kernel 3: fully fused 5-stage LPIPS (both images) --------------
_LPIPS_SHIFT = jnp.array([-0.030, -0.088, -0.188], jnp.float32)
_LPIPS_SCALE = jnp.array([0.458, 0.448, 0.450], jnp.float32)
_LPIPS_CHANNELS = [3, 8, 16, 32, 64, 64]


def init_lpips_params(key):
    # TODO(synk): real LPIPS uses pretrained VGG16 + learned net-lin weights; this
    # deterministic 5-stage mini-VGG with synthetic weights reproduces the structure.
    params = []
    for i in range(5):
        cin, cout = _LPIPS_CHANNELS[i], _LPIPS_CHANNELS[i + 1]
        key, k1, k2, k3 = jax.random.split(key, 4)
        w = jax.random.normal(k1, (3, 3, cin, cout), jnp.float32) / np.sqrt(9 * cin)
        b = jax.random.normal(k2, (cout,), jnp.float32) * 0.01
        lin = jnp.abs(jax.random.normal(k3, (cout,), jnp.float32)) * 0.1
        params.append((w, b.reshape(1, cout), lin.reshape(1, cout)))
    return params


def _make_lpips_kernel(H, W, n_stages):
    sizes = [(H >> s, W >> s) for s in range(n_stages)]

    def kernel(*refs):
        xg_ref, xr_ref = refs[0], refs[1]
        prefs = refs[2:2 + 3 * n_stages]
        drefs = refs[2 + 3 * n_stages:2 + 4 * n_stages]
        scratch = refs[2 + 4 * n_stages:]

        def make_loader(ref, has_batch_dim):
            if has_batch_dim:
                return lambda dh, dw, h, w: ref[0, dh:dh + h, dw:dw + w, :]
            return lambda dh, dw, h, w: ref[dh:dh + h, dw:dw + w, :]

        load_g = make_loader(xg_ref, True)
        load_r = make_loader(xr_ref, True)

        for s in range(n_stages):
            h, w = sizes[s]
            w_ref = prefs[3 * s]                 # (3, 3, cin, cout) f32
            bias = prefs[3 * s + 1][...]         # (1, cout) f32
            lin = prefs[3 * s + 2][...]          # (1, cout) f32
            cin, cout = w_ref.shape[2], w_ref.shape[3]

            def conv(load):
                # "same" 3x3 conv as 9 shifted bf16 matmuls, f32 accumulation.
                acc = None
                for dh in range(3):
                    for dw in range(3):
                        patch = load(dh, dw, h, w).astype(jnp.bfloat16)       # (h, w, cin)
                        wtap = jnp.broadcast_to(
                            w_ref[dh, dw].astype(jnp.bfloat16), (h, cin, cout))
                        t = jnp.matmul(patch, wtap,
                                       preferred_element_type=jnp.float32)    # (h, w, cout)
                        acc = t if acc is None else acc + t
                return jnp.maximum(acc + bias, 0.0)

            g = conv(load_g)
            r = conv(load_r)

            # LPIPS layer distance: unit-normalize channels, net-lin weighted sq-diff,
            # reduced over channels only (lane reduce) -> per-pixel distance map.
            eps = jnp.float32(1e-10)
            ng = g / (jnp.sqrt(jnp.sum(g * g, axis=-1, keepdims=True)) + eps)
            nr = r / (jnp.sqrt(jnp.sum(r * r, axis=-1, keepdims=True)) + eps)
            dd = ng - nr
            drefs[s][0] = jnp.sum(dd * dd * lin, axis=-1, keepdims=True)      # (h, w, 1)

            if s + 1 < n_stages:
                # 2x2 average pool, written straight into the next stage's zero-halo
                # VMEM scratch (H-pool via leading-dim fold, W-pool via tiny MXU matmul).
                hp, wp = h // 2, w // 2
                ii = jax.lax.broadcasted_iota(jnp.int32, (wp, w), 0)
                jj = jax.lax.broadcasted_iota(jnp.int32, (wp, w), 1)
                pw = (jnp.where(jj == 2 * ii, 0.25, 0.0)
                      + jnp.where(jj == 2 * ii + 1, 0.25, 0.0))
                pwb = jnp.broadcast_to(pw, (hp, wp, w))

                def pool(y):
                    y4 = y.reshape(hp, 2, w, cout)           # split leading dim only
                    yh = y4[:, 0] + y4[:, 1]                 # (hp, w, cout)
                    return jnp.matmul(pwb, yh, preferred_element_type=jnp.float32)

                buf_g, buf_r = scratch[2 * s], scratch[2 * s + 1]
                buf_g[...] = jnp.zeros_like(buf_g)
                buf_r[...] = jnp.zeros_like(buf_r)
                buf_g[1:hp + 1, 1:wp + 1, :] = pool(g)
                buf_r[1:hp + 1, 1:wp + 1, :] = pool(r)
                load_g = make_loader(buf_g, False)
                load_r = make_loader(buf_r, False)

    return kernel


def lpips_loss(gen_im, ref_im, params):
    # gen_im, ref_im: (N, 3, H, W) NCHW in [-1, 1]
    N, _, H, W = gen_im.shape
    n_stages = len(params)
    assert H % (1 << (n_stages - 1)) == 0 and W % (1 << (n_stages - 1)) == 0

    # TODO(synk): fold this per-channel affine into the stage-1 weights (shift-valued
    # halo) so this pass is only the unavoidable NCHW->NHWC transpose + halo pad.
    def prep_pad(x):
        x = jnp.transpose(x, (0, 2, 3, 1)).astype(jnp.float32)
        x = (x - _LPIPS_SHIFT) / _LPIPS_SCALE
        return jnp.pad(x, ((0, 0), (1, 1), (1, 1), (0, 0)))

    xg, xr = prep_pad(gen_im), prep_pad(ref_im)

    sizes = [(H >> s, W >> s) for s in range(n_stages)]
    couts = [int(p[0].shape[-1]) for p in params]

    in_specs = [pl.BlockSpec((1, H + 2, W + 2, 3), lambda n: (n, 0, 0, 0)),
                pl.BlockSpec((1, H + 2, W + 2, 3), lambda n: (n, 0, 0, 0))]
    flat_params = []
    for (w, b, lin) in params:
        in_specs.append(pl.BlockSpec(w.shape, lambda n: (0, 0, 0, 0)))
        in_specs.append(pl.BlockSpec(b.shape, lambda n: (0, 0)))
        in_specs.append(pl.BlockSpec(lin.shape, lambda n: (0, 0)))
        flat_params += [w, b, lin]

    out_shape = tuple(jax.ShapeDtypeStruct((N, sizes[s][0], sizes[s][1], 1), jnp.float32)
                      for s in range(n_stages))
    out_specs = tuple(pl.BlockSpec((1, sizes[s][0], sizes[s][1], 1),
                                   lambda n: (n, 0, 0, 0))
                      for s in range(n_stages))

    scratch_shapes = []
    for s in range(n_stages - 1):
        hs, ws = sizes[s + 1]
        scratch_shapes.append(pltpu.VMEM((hs + 2, ws + 2, couts[s]), jnp.float32))
        scratch_shapes.append(pltpu.VMEM((hs + 2, ws + 2, couts[s]), jnp.float32))

    dists = pl.pallas_call(
        _make_lpips_kernel(H, W, n_stages),
        out_shape=out_shape,
        grid_spec=pltpu.PrefetchScalarGridSpec(
            num_scalar_prefetch=0,
            grid=(N,),
            in_specs=in_specs,
            out_specs=out_specs,
            scratch_shapes=scratch_shapes,
        ),
        compiler_params=pltpu.CompilerParams(
            dimension_semantics=("parallel",)),       # batch shards across TCs on v7x
    )(xg, xr, *flat_params)

    total = jnp.float32(0.0)
    for s in range(n_stages):
        hs, ws = sizes[s]
        total = total + jnp.sum(dists[s]) / (hs * ws)   # spatial mean, summed over batch
    return total


# ----------------------------- the loss builder ------------------------------------
class BaldHairEmbeddingLossBuilder:
    def __init__(self, opt, key):
        self.opt = opt
        self.parsed_loss = [[opt.l2_lambda, 'l2'], [opt.percept_lambda, 'percep']]
        self.lpips_params = init_lpips_params(key)
        tmp = np.zeros(16, np.float32)
        tmp[0] = 1.0
        self.w_wo_background = jnp.asarray(1.0 - tmp)
        self.w_only_background = jnp.asarray(tmp)
        # TODO(synk): StyleLoss (pretrained VGG activations) is unused by forward(); omitted.

    def _loss_l2(self, gen_im, ref_im):
        return mse_loss(gen_im, ref_im)

    def _loss_lpips(self, gen_im, ref_im):
        return lpips_loss(gen_im, ref_im, self.lpips_params)

    def cross_entropy_loss_wo_background(self, down_seg, target_mask):
        return self.opt.ce_lambda * weighted_cross_entropy(
            down_seg, target_mask, self.w_wo_background)

    def cross_entropy_loss_only_background(self, down_seg, target_mask):
        return self.opt.ce_lambda * weighted_cross_entropy(
            down_seg, target_mask, self.w_only_background)

    def forward(self, ref_im_H, ref_im_L, gen_im_H, gen_im_L,
                down_seg=None, wo_bg_seg=None):
        loss = jnp.float32(0.0)
        losses = {}
        loss_fun_dict = {'l2': self._loss_l2, 'percep': self._loss_lpips}
        for weight, loss_type in self.parsed_loss:
            if loss_type == 'l2':
                var_dict = {'gen_im': gen_im_H, 'ref_im': ref_im_H}
            else:
                var_dict = {'gen_im': gen_im_L, 'ref_im': ref_im_L}
            tmp_loss = loss_fun_dict[loss_type](**var_dict)
            losses[loss_type] = tmp_loss
            loss = loss + weight * tmp_loss
        if down_seg is not None and wo_bg_seg is not None:
            ce_loss = self.cross_entropy_loss_wo_background(down_seg, wo_bg_seg)
            losses['ce_loss'] = ce_loss
            loss = loss + ce_loss
        return loss, losses


# ----------------------------- demo -------------------------------------------------
if __name__ == "__main__":
    key = jax.random.PRNGKey(0)
    ks = jax.random.split(key, 8)
    opt = SimpleNamespace(l2_lambda=1.0, percept_lambda=1.0, ce_lambda=1.0,
                          style_lambda=1.0, device='tpu')
    builder = BaldHairEmbeddingLossBuilder(opt, ks[0])

    ref_im_H = jax.random.uniform(ks[1], (2, 3, 32, 32), jnp.float32, -1.0, 1.0)
    gen_im_H = jax.random.uniform(ks[2], (2, 3, 32, 32), jnp.float32, -1.0, 1.0)
    ref_im_L = jax.random.uniform(ks[3], (2, 3, 32, 32), jnp.float32, -1.0, 1.0)
    gen_im_L = jax.random.uniform(ks[4], (2, 3, 32, 32), jnp.float32, -1.0, 1.0)
    down_seg = jax.random.normal(ks[5], (2, 16, 16, 16), jnp.float32)   # (N, 16 classes, H, W)
    wo_bg_seg = jax.random.randint(ks[6], (2, 16, 16), 0, 16)            # (N, H, W) labels

    loss, losses = builder.forward(ref_im_H, ref_im_L, gen_im_H, gen_im_L,
                                   down_seg, wo_bg_seg)
    jax.block_until_ready(loss)
    for v in losses.values():
        jax.block_until_ready(v)
    print("KERNEL_OK")
</pallas_src>

<mosaic_0001>
module attributes {stable_mosaic.version = 11 : i64} {
  func.func @_sse_kernel(%arg0: i32, %arg1: i32, %arg2: memref<24x128xf32, #tpu.memory_space<vmem>>, %arg3: memref<24x128xf32, #tpu.memory_space<vmem>>, %arg4: memref<8x128xf32, #tpu.memory_space<vmem>>) attributes {dimension_semantics = [#tpu.dimension_semantics<parallel>, #tpu.dimension_semantics<arbitrary>], iteration_bounds = array<i64: 2, 1>, scalar_prefetch = 0 : i64, scratch_operands = 0 : i64, tpu.core_type = #tpu.core_type<tc>, window_params = [{transform_indices = @transform_0, window_bounds = array<i64: 24, 128>}, {transform_indices = @transform_1, window_bounds = array<i64: 24, 128>}, {transform_indices = @transform_2, window_bounds = array<i64: 8, 128>}]} {
    %c0_i32 = arith.constant 0 : i32
    %0 = arith.cmpi eq, %arg1, %c0_i32 : i32
    %1 = arith.extui %0 : i1 to i32
    %c0_i32_0 = arith.constant 0 : i32
    %2 = arith.cmpi ne, %1, %c0_i32_0 : i32
    scf.if %2 {
      %cst = arith.constant 0.000000e+00 : f32
      %15 = vector.broadcast %cst : f32 to vector<8x128xf32>
      %c0_8 = arith.constant 0 : index
      %c0_9 = arith.constant 0 : index
      %16 = vector.load %arg4[%c0_8, %c0_9] : memref<8x128xf32, #tpu.memory_space<vmem>>, vector<8x128xf32>
      tpu.vector_store %arg4[%c0_8, %c0_9], %15 {strides = array<i32>} : memref<8x128xf32, #tpu.memory_space<vmem>>, vector<8x128xf32>,
    } else {
    }
    %c0 = arith.constant 0 : index
    %c0_1 = arith.constant 0 : index
    %3 = vector.load %arg2[%c0, %c0_1] : memref<24x128xf32, #tpu.memory_space<vmem>>, vector<24x128xf32>
    %c0_2 = arith.constant 0 : index
    %c0_3 = arith.constant 0 : index
    %4 = vector.load %arg3[%c0_2, %c0_3] : memref<24x128xf32, #tpu.memory_space<vmem>>, vector<24x128xf32>
    %5 = arith.subf %3, %4 : vector<24x128xf32>
    %6 = arith.mulf %5, %5 : vector<24x128xf32>
    %7 = vector.extract_strided_slice %6 {offsets = [0, 0], sizes = [8, 128], strides = [1, 1]} : vector<24x128xf32> to vector<8x128xf32>
    %8 = vector.extract_strided_slice %6 {offsets = [8, 0], sizes = [8, 128], strides = [1, 1]} : vector<24x128xf32> to vector<8x128xf32>
    %9 = arith.addf %7, %8 : vector<8x128xf32>
    %10 = vector.extract_strided_slice %6 {offsets = [16, 0], sizes = [8, 128], strides = [1, 1]} : vector<24x128xf32> to vector<8x128xf32>
    %11 = arith.addf %9, %10 : vector<8x128xf32>
    %c0_4 = arith.constant 0 : index
    %c0_5 = arith.constant 0 : index
    %12 = vector.load %arg4[%c0_4, %c0_5] : memref<8x128xf32, #tpu.memory_space<vmem>>, vector<8x128xf32>
    %13 = arith.addf %12, %11 : vector<8x128xf32>
    %c0_6 = arith.constant 0 : index
    %c0_7 = arith.constant 0 : index
    %14 = vector.load %arg4[%c0_6, %c0_7] : memref<8x128xf32, #tpu.memory_space<vmem>>, vector<8x128xf32>
    tpu.vector_store %arg4[%c0_6, %c0_7], %13 {strides = array<i32>} : memref<8x128xf32, #tpu.memory_space<vmem>>, vector<8x128xf32>,
    return
  }
  func.func @transform_0(%arg0: i32, %arg1: i32) -> (i32, i32) {
    %c1_i32 = arith.constant 1 : i32
    %0 = arith.muli %arg0, %c1_i32 : i32
    %1 = arith.addi %0, %arg1 : i32
    %c0_i32 = arith.constant 0 : i32
    %c0_i32_0 = arith.constant 0 : i32
    return %1, %c0_i32 : i32, i32
  }
  func.func @transform_1(%arg0: i32, %arg1: i32) -> (i32, i32) {
    %c1_i32 = arith.constant 1 : i32
    %0 = arith.muli %arg0, %c1_i32 : i32
    %1 = arith.addi %0, %arg1 : i32
    %c0_i32 = arith.constant 0 : i32
    %c0_i32_0 = arith.constant 0 : i32
    return %1, %c0_i32 : i32, i32
  }
  func.func @transform_2(%arg0: i32, %arg1: i32) -> (i32, i32) {
    %c0_i32 = arith.constant 0 : i32
    %c0_i32_0 = arith.constant 0 : i32
    return %arg0, %c0_i32 : i32, i32
  }
}

</mosaic_0001>

<llo_original>
// kernel: tpu_custom_call.1
$region0: #{tpu_custom_call.1}
  #allocation0 [shape = 'u32[]', space=smem, size = 0x4, offset = 0x4, fixed_abs, tag = 'smem constant byte address 0x4 - core index']
  #allocation1 [shape = 'u32[144,128]{1,0:T(1,128)}', space=vmem, size = 0x12000, scoped, tag = 'internal scratch']
  %s0 = inlined_call_operand.hbm [shape: f32[48,128], index: 0, kind: input, shape index: {}]
  %s1 = inlined_call_operand.hbm [shape: f32[48,128], index: 1, kind: input, shape index: {}]
  %s2 = inlined_call_operand.hbm [shape: f32[16,128], index: 2, kind: output, shape index: {}]
  %s3 = sld [smem:[#allocation0]]
  $region53: #{tpu_custom_call.1} parent=0
    _
  %s5 = ssub.s32 1, %s3
  %s6 = scalar_select 0, %s5, %s3
  $region1: #{tpu_custom_call.1} parent=0
    #allocation2 [shape = 'u8[24576]{0}', space=vmem, size = 0x6000, scoped, tag = 'input window, operand 0']
    #allocation3 [shape = 's32[2]{0}', space=sflag, size = 0x8, scoped, tag = 'scoped memory for tpu_custom_call.1']
    #allocation4 [shape = 's32[2]{0}', space=sflag, size = 0x8, scoped, tag = 'scoped memory for tpu_custom_call.1']
    #allocation5 [shape = 'u8[24576]{0}', space=vmem, size = 0x6000, scoped, tag = 'input window, operand 1']
    #allocation6 [shape = 's32[2]{0}', space=sflag, size = 0x8, scoped, tag = 'scoped memory for tpu_custom_call.1']
    #allocation7 [shape = 'u8[8192]{0}', space=vmem, size = 0x2000, scoped, tag = 'output window, operand 0']
    %7 = vsyncpa [#allocation3], 0
    %s8 = scalar_lea.sflag [#allocation3], 1
    %9 = vsyncpa %s8, 0
    %10 = vsyncpa [#allocation6], 0
    %s11 = scalar_lea.sflag [#allocation6], 1
    %12 = vsyncpa %s11, 0
    %13 = vsyncpa [#allocation4], 0
    %s14 = scalar_lea.sflag [#allocation4], 1
    %15 = vsyncpa %s14, 0
    loop: start=0, step=1, limit=4
    $region2: #{tpu_custom_call.1} parent=1 // loop_pre_header
      _
    $region3: #{tpu_custom_call.1} parent=1 // loop_header
      %s17 = sphi 0, %s21
      %p18 = scmp.ge.s32.totalorder %s17, 4
      %s24 = sphi 0, %s36
      %s25 = sphi 0, %s32
      %s26 = sphi 0, %s24
      %s27 = sphi 0, %s25
      %s28 = sphi 0, %s26
      %s29 = sphi 0, %s27
      %s41 = sphi 0, %s43
      %s44 = sphi 0, %s41
      %s45 = sphi 0, %s44
      %s61 = sphi 0, %s45
      %s69 = sphi 0, %s71
      %s72 = sphi 0, %s69
      %s73 = sphi 0, %s72
      %s89 = sphi 0, %s73
      %s95 = sphi 0, %s97
      %s98 = sphi 0, %s95
      %s99 = sphi 0, %s98
      %s115 = sphi 0, %s99
    $region4: #{tpu_custom_call.1} parent=1 // loop_header_branch
      %20 = sbr.rel (%p18) target = $region8
    $region5: #{tpu_custom_call.1} parent=1 // loop_body
      %s22 = ssub.s32 %s17, 1
      %s23 = ssub.s32 %s17, 2
      %s30 = sadd.s32 1, %s25
      %p31 = scmp.ge.s32.totalorder %s30, 1
      %s32 = scalar_select %p31, 0, %s30
      %s33 = sadd.s32 1, %s24
      %s34 = scalar_select %p31, %s33, %s24
      %p35 = scmp.ge.s32.totalorder %s34, 2
      %s36 = scalar_select %p35, 0, %s34
      %s37 = sadd.s32 %s24, %s25
      %s38 = sadd.s32 %s36, %s32
      %s39 = ssub.s32 %s37, %s38
      %p40 = scmp.eq.s32.totalorder %s39, 0
      %s42 = sadd.s32 %s41, 1
      %s43 = scalar_select %p40, %s41, %s42
      %p46 = pneg %p40
      %p47 = scmp.eq.s32.totalorder %s17, 1
      %p48 = por %p46, %p47
      %p49 = scmp.ne.s32.totalorder %s41, %s44
      %p50 = scmp.eq.s32.totalorder %s17, 0
      %p51 = por %p49, %p50
      %p52 = scmp.ne.s32.totalorder %s41, %s44
      %p53 = scmp.eq.s32.totalorder %s22, 1
      %p54 = por %p52, %p53
      %p55 = scmp.ne.s32.totalorder %s44, %s45
      %p56 = scmp.eq.s32.totalorder %s22, 0
      %p57 = por %p55, %p56
      %p58 = scmp.ne.s32.totalorder %s44, %s45
      %p59 = scmp.eq.s32.totalorder %s23, 1
      %p60 = por %p58, %p59
      %p62 = scmp.ne.s32.totalorder %s45, %s61
      %p63 = scmp.eq.s32.totalorder %s23, 0
      %p64 = por %p62, %p63
      %s65 = sadd.s32 %s24, %s25
      %s66 = sadd.s32 %s36, %s32
      %s67 = ssub.s32 %s65, %s66
      %p68 = scmp.eq.s32.totalorder %s67, 0
      %s70 = sadd.s32 %s69, 1
      %s71 = scalar_select %p68, %s69, %s70
      %p74 = pneg %p68
      %p75 = scmp.eq.s32.totalorder %s17, 1
      %p76 = por %p74, %p75
      %p77 = scmp.ne.s32.totalorder %s69, %s72
      %p78 = scmp.eq.s32.totalorder %s17, 0
      %p79 = por %p77, %p78
      %p80 = scmp.ne.s32.totalorder %s69, %s72
      %p81 = scmp.eq.s32.totalorder %s22, 1
      %p82 = por %p80, %p81
      %p83 = scmp.ne.s32.totalorder %s72, %s73
      %p84 = scmp.eq.s32.totalorder %s22, 0
      %p85 = por %p83, %p84
      %p86 = scmp.ne.s32.totalorder %s72, %s73
      %p87 = scmp.eq.s32.totalorder %s23, 1
      %p88 = por %p86, %p87
      %p90 = scmp.ne.s32.totalorder %s73, %s89
      %p91 = scmp.eq.s32.totalorder %s23, 0
      %p92 = por %p90, %p91
      %s93 = ssub.s32 %s24, %s36
      %p94 = scmp.eq.s32.totalorder %s93, 0
      %s96 = sadd.s32 %s95, 1
      %s97 = scalar_select %p94, %s95, %s96
      %p100 = pneg %p94
      %p101 = scmp.eq.s32.totalorder %s17, 1
      %p102 = por %p100, %p101
      %p103 = scmp.ne.s32.totalorder %s95, %s98
      %p104 = scmp.eq.s32.totalorder %s17, 0
      %p105 = por %p103, %p104
      %p106 = scmp.ne.s32.totalorder %s95, %s98
      %p107 = scmp.eq.s32.totalorder %s22, 1
      %p108 = por %p106, %p107
      %p109 = scmp.ne.s32.totalorder %s98, %s99
      %p110 = scmp.eq.s32.totalorder %s22, 0
      %p111 = por %p109, %p110
      %p112 = scmp.ne.s32.totalorder %s98, %s99
      %p113 = scmp.eq.s32.totalorder %s23, 1
      %p114 = por %p112, %p113
      %p116 = scmp.ne.s32.totalorder %s99, %s115
      %p117 = scmp.eq.s32.totalorder %s23, 0
      %p118 = por %p116, %p117
      %p119 = scmp.le.s32.totalorder 1, %s17
      %p120 = scmp.lt.s32.totalorder %s17, 3
      %p121 = pnand %p119, %p120
      %p122 = pneg %p121
      // Predicated region
      $region9: #{tpu_custom_call.1} parent=5 // pred_check
        _
      $region10: #{tpu_custom_call.1} parent=5 // pred_check_branch
        %124 = sbr.rel (%p121) target = $region12
      $region11: #{tpu_custom_call.1} parent=5 // pred_region
        %s125 = ssub.s32 %s17, 1
      $region12: #{tpu_custom_call.1} parent=5 // pred_fallthru
        _
      %p126 = scmp.lt.s32.totalorder %s17, 2
      // Predicated region
      $region13: #{tpu_custom_call.1} parent=5 // pred_check
        %p127 = pneg %p126
      $region14: #{tpu_custom_call.1} parent=5 // pred_check_branch
        %129 = sbr.rel (%p127) target = $region16
      $region15: #{tpu_custom_call.1} parent=5 // pred_region
        // Predicated region
        $region17: #{tpu_custom_call.1} parent=15 // pred_check
          %p130 = pneg %p51
        $region18: #{tpu_custom_call.1} parent=15 // pred_check_branch
          %132 = sbr.rel (%p130) target = $region20
        $region19: #{tpu_custom_call.1} parent=15 // pred_region
          %s133 = sand.u32 %s41, 1
          %s134 = scalar_lea.sflag [#allocation3], %s133
          %s135 = sand.u32 %s41, 1
          %s136 = smul.addr %s135, 24
          %s137 = scalar_lea.vmem [#allocation2], %s136
          %s138 = sadd.s32 %s24, %s25
          %s139 = smul.u32 3, %s138
          %s141 = ssub.s32 384, 384
          %142 = vsyncadd %s134, %s141
          %s143 = smul.addr %s139, 128
          %s144 = scalar_lea.hbm %s0, %s143
          %s145 = sshll.u32 %s137, 4
          %s146 = int_to_ptr.vmem [resolvable:$true] %s145
          %151 = dma.hbm_to_vmem [thread:$0]  %s144, 384, %s146, %s134, 128, 128, 8
        $region20: #{tpu_custom_call.1} parent=15 // pred_fallthru
          _
        // Predicated region
        $region21: #{tpu_custom_call.1} parent=15 // pred_check
          %p152 = pneg %p79
        $region22: #{tpu_custom_call.1} parent=15 // pred_check_branch
          %154 = sbr.rel (%p152) target = $region24
        $region23: #{tpu_custom_call.1} parent=15 // pred_region
          %s155 = sand.u32 %s69, 1
          %s156 = scalar_lea.sflag [#allocation6], %s155
          %s157 = sand.u32 %s69, 1
          %s158 = smul.addr %s157, 24
          %s159 = scalar_lea.vmem [#allocation5], %s158
          %s160 = sadd.s32 %s24, %s25
          %s161 = smul.u32 3, %s160
          %s163 = ssub.s32 384, 384
          %164 = vsyncadd %s156, %s163
          %s165 = smul.addr %s161, 128
          %s166 = scalar_lea.hbm %s1, %s165
          %s167 = sshll.u32 %s159, 4
          %s168 = int_to_ptr.vmem [resolvable:$true] %s167
          %173 = dma.hbm_to_vmem [thread:$0]  %s166, 384, %s168, %s156, 128, 128, 8
        $region24: #{tpu_custom_call.1} parent=15 // pred_fallthru
          _
      $region16: #{tpu_custom_call.1} parent=5 // pred_fallthru
        _
      %p174 = scmp.le.s32.totalorder 1, %s17
      %p175 = scmp.lt.s32.totalorder %s17, 3
      %p176 = pnand %p174, %p175
      %p177 = pneg %p176
      // Predicated region
      $region25: #{tpu_custom_call.1} parent=5 // pred_check
        _
      $region26: #{tpu_custom_call.1} parent=5 // pred_check_branch
        %179 = sbr.rel (%p176) target = $region28
      $region27: #{tpu_custom_call.1} parent=5 // pred_region
        %s180 = ssub.s32 %s17, 1
        %s181 = sand.u32 %s44, 1
        %s182 = scalar_lea.sflag [#allocation3], %s181
        %s183 = sand.u32 %s44, 1
        %s184 = smul.addr %s183, 24
        %s185 = scalar_lea.vmem [#allocation2], %s184
        // Predicated region
        $region29: #{tpu_custom_call.1} parent=27 // pred_check
          %p186 = pneg %p57
        $region30: #{tpu_custom_call.1} parent=27 // pred_check_branch
          %188 = sbr.rel (%p186) target = $region32
        $region31: #{tpu_custom_call.1} parent=27 // pred_region
          %189 = dma.done %s182, 384
        $region32: #{tpu_custom_call.1} parent=27 // pred_fallthru
          _
        %s190 = sand.u32 %s72, 1
        %s191 = scalar_lea.sflag [#allocation6], %s190
        %s192 = sand.u32 %s72, 1
        %s193 = smul.addr %s192, 24
        %s194 = scalar_lea.vmem [#allocation5], %s193
        // Predicated region
        $region33: #{tpu_custom_call.1} parent=27 // pred_check
          %p195 = pneg %p85
        $region34: #{tpu_custom_call.1} parent=27 // pred_check_branch
          %197 = sbr.rel (%p195) target = $region36
        $region35: #{tpu_custom_call.1} parent=27 // pred_region
          %198 = dma.done %s191, 384
        $region36: #{tpu_custom_call.1} parent=27 // pred_fallthru
          _
        %s199 = sand.u32 %s44, 1
        %s200 = scalar_lea.sflag [#allocation3], %s199
        %s201 = sand.u32 %s44, 1
        %s202 = smul.addr %s201, 24
        %s203 = scalar_lea.vmem [#allocation2], %s202
        %p204 = pneg %p57
        %p205 = pneg %p54
        %s206 = sand.u32 %s72, 1
        %s207 = scalar_lea.sflag [#allocation6], %s206
        %s208 = sand.u32 %s72, 1
        %s209 = smul.addr %s208, 24
        %s210 = scalar_lea.vmem [#allocation5], %s209
        %p211 = pneg %p85
        %p212 = pneg %p82
        %p213 = pneg %p111
        %p214 = pneg %p108
        %s215 = sand.u32 %s98, 1
        %s216 = scalar_lea.sflag [#allocation4], %s215
        %s217 = sand.u32 %s98, 1
        %s218 = smul.addr %s217, 8
        %s219 = scalar_lea.vmem [#allocation7], %s218
        %s220 = sadd.s32 %s26, %s27
        %s221 = smul.u32 3, %s220
        %s222 = sadd.s32 %s26, %s27
        %s223 = smul.u32 3, %s222
        %p224 = scmp.eq.s32.totalorder %s27, 0
        // Predicated region
        $region37: #{tpu_custom_call.1} parent=27 // pred_check
          %p225 = pneg %p224
        $region38: #{tpu_custom_call.1} parent=27 // pred_check_branch
          %227 = sbr.rel (%p225) target = $region40
        $region39: #{tpu_custom_call.1} parent=27 // pred_region
          %228 = vst [vmem:[%s219] sm:$0xff] 0.0
        $region40: #{tpu_custom_call.1} parent=27 // pred_fallthru
          _
        %v229 = vld [vmem:[%s185] sm:$0xff]
        %v230 = vld [vmem:[%s185 + $0x8] sm:$0xff]
        %v231 = vld [vmem:[%s185 + $0x10] sm:$0xff]
        %v232 = vld [vmem:[%s194] sm:$0xff]
        %v233 = vld [vmem:[%s194 + $0x8] sm:$0xff]
        %v234 = vld [vmem:[%s194 + $0x10] sm:$0xff]
        %v235 = vsub.f32 %v229, %v232
        %v236 = vsub.f32 %v230, %v233
        %v237 = vsub.f32 %v231, %v234
        %v238 = vmul.f32 %v235, %v235
        %v239 = vmul.f32 %v236, %v236
        %v240 = vmul.f32 %v237, %v237
        %v241 = vadd.f32 %v238, %v239
        %v242 = vadd.f32 %v241, %v240
        %v243 = vld [vmem:[%s219] sm:$0xff]
        %v244 = vadd.f32 %v243, %v242
        %245 = vst [vmem:[%s219] sm:$0xff] %v244
        %s246 = sand.u32 %s98, 1
        %s247 = scalar_lea.sflag [#allocation4], %s246
        %s248 = sand.u32 %s98, 1
        %s249 = smul.addr %s248, 8
        %s250 = scalar_lea.vmem [#allocation7], %s249
        // Predicated region
        $region41: #{tpu_custom_call.1} parent=27 // pred_check
          %p251 = pneg %p108
        $region42: #{tpu_custom_call.1} parent=27 // pred_check_branch
          %253 = sbr.rel (%p251) target = $region44
        $region43: #{tpu_custom_call.1} parent=27 // pred_region
          %s255 = ssub.s32 128, 128
          %256 = vsyncadd %s247, %s255
          %s257 = smul.addr %s26, 128
          %s258 = scalar_lea.hbm %s2, %s257
          %s260 = sshll.u32 %s250, 4
          %s261 = int_to_ptr.vmem [resolvable:$true] %s260
          %263 = dma.vmem_to_hbm [thread:$0]  %s261, 128, %s258, %s247
        $region44: #{tpu_custom_call.1} parent=27 // pred_fallthru
          _
      $region28: #{tpu_custom_call.1} parent=5 // pred_fallthru
        _
      %p264 = scmp.le.s32.totalorder 2, %s17
      // Predicated region
      $region45: #{tpu_custom_call.1} parent=5 // pred_check
        %p265 = pneg %p264
      $region46: #{tpu_custom_call.1} parent=5 // pred_check_branch
        %267 = sbr.rel (%p265) target = $region48
      $region47: #{tpu_custom_call.1} parent=5 // pred_region
        %s268 = ssub.s32 %s17, 2
        // Predicated region
        $region49: #{tpu_custom_call.1} parent=47 // pred_check
          %p269 = pneg %p114
        $region50: #{tpu_custom_call.1} parent=47 // pred_check_branch
          %271 = sbr.rel (%p269) target = $region52
        $region51: #{tpu_custom_call.1} parent=47 // pred_region
          %s272 = sand.u32 %s99, 1
          %s273 = scalar_lea.sflag [#allocation4], %s272
          %s274 = sand.u32 %s99, 1
          %s275 = smul.addr %s274, 8
          %s276 = scalar_lea.vmem [#allocation7], %s275
          %277 = dma.done %s273, 128
        $region52: #{tpu_custom_call.1} parent=47 // pred_fallthru
          _
      $region48: #{tpu_custom_call.1} parent=5 // pred_fallthru
        _
    $region6: #{tpu_custom_call.1} parent=1 // loop_footer
      %s21 = sadd.s32 1, %s17
    $region7: #{tpu_custom_call.1} parent=1 // loop_footer_branch
      %16 = sbr.rel target = $region3
    $region8: #{tpu_custom_call.1} parent=1 // loop_exit
      _
    %278 = vsyncpa [#allocation3], 1
    %s279 = scalar_lea.sflag [#allocation3], 1
    %280 = vsyncpa %s279, 1
    %281 = vsyncpa [#allocation6], 1
    %s282 = scalar_lea.sflag [#allocation6], 1
    %283 = vsyncpa %s282, 1
    %284 = vsyncpa [#allocation4], 1
    %s285 = scalar_lea.sflag [#allocation4], 1
    %286 = vsyncpa %s285, 1

</llo_original>
